<compile_context>
chip_gen: v6e
topology: v6e:2x2x1
jax: 0.10.0
libtpu: 0.0.40
codegen_flags: <defaults>
</compile_context>

<pallas_src>
from functools import partial

import jax
import jax.numpy as jnp
from jax.experimental import pallas as pl
from jax.experimental.pallas import tpu as pltpu


def _sepconv_kernel(x_ref, b_ref, o_ref):
    """Single fused-separable-conv matmul.

    x_ref : (M_pad, K_pad)   im2col'd, zero-padded input rows (M = N*H_out folded).
    b_ref : (K_pad, N_pad)   width-Toeplitz fused depthwise*pointwise weights.
    o_ref : (M_pad, N_pad)   lane-dense output (N_pad = 128 at this config).
    """
    o_ref[...] = jnp.dot(
        x_ref[...], b_ref[...], preferred_element_type=jnp.float32
    ).astype(o_ref.dtype)


def _round_up(v, m):
    return ((v + m - 1) // m) * m


@partial(jax.jit, static_argnames=("stride", "padding", "dilation"))
def separable_conv2d(x_nchw, dw_torch, pw_torch, *, stride=1, padding=0, dilation=1):
    """x_nchw: (N, Cin, H, W); dw_torch: (Cin, 1, KH, KW); pw_torch: (Cout, Cin, 1, 1).

    Matches nn.Conv2d(groups=Cin, bias=False) followed by 1x1 Conv2d(bias=False).
    """
    if stride != 1 or dilation != 1:
        # TODO(synk): stride>1 / dilation>1 SeparableConv2d configurations are not implemented.
        raise NotImplementedError("separable_conv2d: only stride=1, dilation=1 supported")

    N, Cin, H, W = x_nchw.shape
    KH, KW = int(dw_torch.shape[2]), int(dw_torch.shape[3])
    Cout = int(pw_torch.shape[0])
    H_out = H + 2 * padding - KH + 1
    W_out = W + 2 * padding - KW + 1

    # ---- wrapper-side layout plumbing: NCHW -> padded NHWC, im2col over kh ----
    x_nhwc = jnp.transpose(x_nchw, (0, 2, 3, 1))                       # (N, H, W, Cin)
    x_pad = jnp.pad(x_nhwc, ((0, 0), (padding, padding), (padding, padding), (0, 0)))
    Hp, Wp = x_pad.shape[1], x_pad.shape[2]
    x_lanes = x_pad.reshape(N, Hp, Wp * Cin)                           # (N, Hp, Wp*Cin)

    # H-direction im2col: stack the KH row-shifted windows along the lane (K) axis.
    slabs = [x_lanes[:, kh:kh + H_out, :] for kh in range(KH)]         # KH x (N, H_out, Wp*Cin)
    x_im2col = jnp.concatenate(slabs, axis=-1)                         # (N, H_out, KH*Wp*Cin)

    K_raw = KH * Wp * Cin
    M_raw = N * H_out
    Nc_raw = W_out * Cout
    K_pad = _round_up(K_raw, 128)          # full MXU K-tiles, unmasked lane loads
    M_pad = _round_up(M_raw, 8)            # sublane-aligned rows
    Nc_pad = _round_up(Nc_raw, 128)        # lane-dense unmasked stores

    x_mat = x_im2col.reshape(M_raw, K_raw)
    x_mat = jnp.pad(x_mat, ((0, M_pad - M_raw), (0, K_pad - K_raw)))

    # ---- fuse depthwise * pointwise and build the width-Toeplitz weight B ----
    # In production this block depends only on the weights and (Wp, W_out); cache it.
    dw_khwc = jnp.transpose(dw_torch[:, 0, :, :], (1, 2, 0))           # (KH, KW, Cin)
    pw_ccout = jnp.transpose(pw_torch[:, :, 0, 0], (1, 0))             # (Cin, Cout)
    w_eff = dw_khwc[:, :, :, None] * pw_ccout[None, None, :, :]        # (KH, KW, Cin, Cout)

    # B[kh, wp*Cin+ci, w*Cout+co] = W_eff[kh, wp-w, ci, co] if 0 <= wp-w < KW else 0
    kw_rel = jnp.arange(Wp)[:, None] - jnp.arange(W_out)[None, :]      # (Wp, W_out)
    valid = (kw_rel >= 0) & (kw_rel < KW)
    kw_idx = jnp.clip(kw_rel, 0, KW - 1)
    b = jnp.where(valid[None, :, :, None, None],
                  w_eff[:, kw_idx, :, :],                              # (KH, Wp, W_out, Cin, Cout)
                  0.0)
    b = jnp.transpose(b, (0, 1, 3, 2, 4)).reshape(KH * Wp * Cin, W_out * Cout)
    b_mat = jnp.pad(b.astype(jnp.float32), ((0, K_pad - K_raw), (0, Nc_pad - Nc_raw)))

    # NOTE: on v6e/v7x cast x_mat/b_mat to bf16 here for MXU-native operands (keep the
    # f32 accumulator); left in f32 to match the f32 reference within 2e-5.

    flops = 2 * M_pad * K_pad * Nc_pad
    bytes_accessed = 4 * (M_pad * K_pad + K_pad * Nc_pad + M_pad * Nc_pad)

    out_flat = pl.pallas_call(
        _sepconv_kernel,
        out_shape=jax.ShapeDtypeStruct((M_pad, Nc_pad), x_nchw.dtype),
        # Single invocation, full arrays resident in VMEM (no double-buffering).
        in_specs=[
            pl.BlockSpec(memory_space=pltpu.MemorySpace.VMEM),
            pl.BlockSpec(memory_space=pltpu.MemorySpace.VMEM),
        ],
        out_specs=pl.BlockSpec(memory_space=pltpu.MemorySpace.VMEM),
        cost_estimate=pl.CostEstimate(
            flops=flops, transcendentals=0, bytes_accessed=bytes_accessed),
    )(x_mat, b_mat)

    out = out_flat[:M_raw, :Nc_raw].reshape(N, H_out, W_out, Cout)
    return jnp.transpose(out, (0, 3, 1, 2))  # back to NCHW


def _reference(x_nchw, dw_torch, pw_torch, padding):
    # Pure-JAX reference replicating PyTorch conv semantics.
    Cin = x_nchw.shape[1]
    dwr = jax.lax.conv_general_dilated(
        x_nchw, dw_torch, window_strides=(1, 1),
        padding=((padding, padding), (padding, padding)),
        dimension_numbers=("NCHW", "OIHW", "NCHW"),
        feature_group_count=Cin)
    return jax.lax.conv_general_dilated(
        dwr, pw_torch, window_strides=(1, 1), padding="VALID",
        dimension_numbers=("NCHW", "OIHW", "NCHW"))


if __name__ == "__main__":
    # Module config: SeparableConv2d(in_channels=4, out_channels=8,
    #                                kernel_size=3, stride=1, padding=1, bias=False)
    N, Cin, H, W = 2, 4, 16, 16
    Cout, K, padding = 8, 3, 1

    key = jax.random.PRNGKey(0)
    kx, kdw, kpw = jax.random.split(key, 3)

    x = jax.random.normal(kx, (N, Cin, H, W), dtype=jnp.float32)
    # Deterministic synthetic parameters (PyTorch weight shapes).
    dw_w = 0.1 * jax.random.normal(kdw, (Cin, 1, K, K), dtype=jnp.float32)      # depthwise
    pw_w = 0.1 * jax.random.normal(kpw, (Cout, Cin, 1, 1), dtype=jnp.float32)   # pointwise

    out = separable_conv2d(x, dw_w, pw_w, stride=1, padding=padding, dilation=1)
    out = jax.block_until_ready(out)

    ref = _reference(x, dw_w, pw_w, padding)
    assert out.shape == (N, Cout, H, W), out.shape
    assert jnp.allclose(out, ref, atol=2e-5, rtol=2e-5), float(jnp.max(jnp.abs(out - ref)))

    print("KERNEL_OK")
</pallas_src>

<mosaic_0001>
module attributes {stable_mosaic.version = 11 : i64} {
  func.func @_sepconv_kernel(%arg0: memref<32x256xf32, #tpu.memory_space<vmem>>, %arg1: memref<256x128xf32, #tpu.memory_space<vmem>>, %arg2: memref<32x128xf32, #tpu.memory_space<vmem>>) attributes {dimension_semantics = [], scalar_prefetch = 0 : i64, scratch_operands = 0 : i64, tpu.core_type = #tpu.core_type<tc>} {
    %c0 = arith.constant 0 : index
    %c0_0 = arith.constant 0 : index
    %0 = vector.load %arg0[%c0, %c0_0] : memref<32x256xf32, #tpu.memory_space<vmem>>, vector<32x256xf32>
    %c0_1 = arith.constant 0 : index
    %c0_2 = arith.constant 0 : index
    %1 = vector.load %arg1[%c0_1, %c0_2] : memref<256x128xf32, #tpu.memory_space<vmem>>, vector<256x128xf32>
    %cst = arith.constant dense<0.000000e+00> : vector<32x128xf32>
    %2 = tpu.matmul %0, %1, %cst {dimension_numbers = #tpu.dot_dimension_numbers<[1], [0], [0], [1], [0, 0, 1, 1], [], []>} : vector<32x256xf32>, vector<256x128xf32>, vector<32x128xf32> -> vector<32x128xf32>
    %c0_3 = arith.constant 0 : index
    %c0_4 = arith.constant 0 : index
    %3 = vector.load %arg2[%c0_3, %c0_4] : memref<32x128xf32, #tpu.memory_space<vmem>>, vector<32x128xf32>
    tpu.vector_store %arg2[%c0_3, %c0_4], %2 {strides = array<i32>} : memref<32x128xf32, #tpu.memory_space<vmem>>, vector<32x128xf32>,
    return
  }
}

</mosaic_0001>

<llo_original>
// kernel: separable_conv2d.1
$region0: #{separable_conv2d.1}
  #allocation0 [shape = 'u32[]', space=smem, size = 0x4, offset = 0x4, fixed_abs, tag = 'smem constant byte address 0x4 - core index']
  #allocation1 [shape = 'u32[144,128]{1,0:T(1,128)}', space=vmem, size = 0x12000, scoped, tag = 'internal scratch']
  %s0 = inlined_call_operand.vmem [shape: f32[32,256], index: 0, kind: input, shape index: {}]
  %s1 = inlined_call_operand.vmem [shape: f32[256,128], index: 1, kind: input, shape index: {}]
  %s2 = inlined_call_operand.vmem [shape: f32[32,128], index: 2, kind: output, shape index: {}]
  %s3 = sld [smem:[#allocation0]]
  $region18: #{separable_conv2d.1} parent=0
    _
  %s5 = ssub.s32 1, %s3
  %s6 = scalar_select 0, %s5, %s3
  // Predicated region
  $region2: #{separable_conv2d.1} parent=0 // pred_check
    _
  $region3: #{separable_conv2d.1} parent=0 // pred_check_branch
    %8 = sbr.rel (0) target = $region5
  $region4: #{separable_conv2d.1} parent=0 // pred_region
    _
  $region5: #{separable_conv2d.1} parent=0 // pred_fallthru
    _
  // Predicated region
  $region6: #{separable_conv2d.1} parent=0 // pred_check
    _
  $region7: #{separable_conv2d.1} parent=0 // pred_check_branch
    %10 = sbr.rel (0) target = $region9
  $region8: #{separable_conv2d.1} parent=0 // pred_region
    _
  $region9: #{separable_conv2d.1} parent=0 // pred_fallthru
    _
  %v11 = vld [vmem:[%s0] sm:$0xff]
  %v12 = vld [vmem:[%s0 + $0x8] sm:$0xff]
  %v13 = vld [vmem:[%s0 + $0x10] sm:$0xff]
  %v14 = vld [vmem:[%s0 + $0x18] sm:$0xff]
  %v15 = vld [vmem:[%s0 + $0x20] sm:$0xff]
  %v16 = vld [vmem:[%s0 + $0x28] sm:$0xff]
  %v17 = vld [vmem:[%s0 + $0x30] sm:$0xff]
  %v18 = vld [vmem:[%s0 + $0x38] sm:$0xff]
  %v19 = vld [vmem:[%s1] sm:$0xff]
  %v20 = vld [vmem:[%s1 + $0x8] sm:$0xff]
  %v21 = vld [vmem:[%s1 + $0x10] sm:$0xff]
  %v22 = vld [vmem:[%s1 + $0x18] sm:$0xff]
  %v23 = vld [vmem:[%s1 + $0x20] sm:$0xff]
  %v24 = vld [vmem:[%s1 + $0x28] sm:$0xff]
  %v25 = vld [vmem:[%s1 + $0x30] sm:$0xff]
  %v26 = vld [vmem:[%s1 + $0x38] sm:$0xff]
  %v27 = vld [vmem:[%s1 + $0x40] sm:$0xff]
  %v28 = vld [vmem:[%s1 + $0x48] sm:$0xff]
  %v29 = vld [vmem:[%s1 + $0x50] sm:$0xff]
  %v30 = vld [vmem:[%s1 + $0x58] sm:$0xff]
  %v31 = vld [vmem:[%s1 + $0x60] sm:$0xff]
  %v32 = vld [vmem:[%s1 + $0x68] sm:$0xff]
  %v33 = vld [vmem:[%s1 + $0x70] sm:$0xff]
  %v34 = vld [vmem:[%s1 + $0x78] sm:$0xff]
  %v35 = vld [vmem:[%s1 + $0x80] sm:$0xff]
  %v36 = vld [vmem:[%s1 + $0x88] sm:$0xff]
  %v37 = vld [vmem:[%s1 + $0x90] sm:$0xff]
  %v38 = vld [vmem:[%s1 + $0x98] sm:$0xff]
  %v39 = vld [vmem:[%s1 + $0xa0] sm:$0xff]
  %v40 = vld [vmem:[%s1 + $0xa8] sm:$0xff]
  %v41 = vld [vmem:[%s1 + $0xb0] sm:$0xff]
  %v42 = vld [vmem:[%s1 + $0xb8] sm:$0xff]
  %v43 = vld [vmem:[%s1 + $0xc0] sm:$0xff]
  %v44 = vld [vmem:[%s1 + $0xc8] sm:$0xff]
  %v45 = vld [vmem:[%s1 + $0xd0] sm:$0xff]
  %v46 = vld [vmem:[%s1 + $0xd8] sm:$0xff]
  %v47 = vld [vmem:[%s1 + $0xe0] sm:$0xff]
  %v48 = vld [vmem:[%s1 + $0xe8] sm:$0xff]
  %v49 = vld [vmem:[%s1 + $0xf0] sm:$0xff]
  %v50 = vld [vmem:[%s1 + $0xf8] sm:$0xff]
  %51 = vmatprep.subr.mxu0 0.0
  %52 = vmatpush1.msra.mxu0 %v34
  %53 = vmatprep.subr.mxu0 0.0
  %54 = vmatpush1.msra.mxu0 %v33
  %55 = vmatprep.subr.mxu0 0.0
  %56 = vmatpush1.msra.mxu0 %v32
  %57 = vmatprep.subr.mxu0 0.0
  %58 = vmatpush1.msra.mxu0 %v31
  %59 = vmatprep.subr.mxu0 0.0
  %60 = vmatpush1.msra.mxu0 %v30
  %61 = vmatprep.subr.mxu0 0.0
  %62 = vmatpush1.msra.mxu0 %v29
  %63 = vmatprep.subr.mxu0 0.0
  %64 = vmatpush1.msra.mxu0 %v28
  %65 = vmatprep.subr.mxu0 0.0
  %66 = vmatpush1.msra.mxu0 %v27
  %67 = vmatprep.subr.mxu0 0.0
  %68 = vmatpush1.msra.mxu0 %v26
  %69 = vmatprep.subr.mxu0 0.0
  %70 = vmatpush1.msra.mxu0 %v25
  %71 = vmatprep.subr.mxu0 0.0
  %72 = vmatpush1.msra.mxu0 %v24
  %73 = vmatprep.subr.mxu0 0.0
  %74 = vmatpush1.msra.mxu0 %v23
  %75 = vmatprep.subr.mxu0 0.0
  %76 = vmatpush1.msra.mxu0 %v22
  %77 = vmatprep.subr.mxu0 0.0
  %78 = vmatpush1.msra.mxu0 %v21
  %79 = vmatprep.subr.mxu0 0.0
  %80 = vmatpush1.msra.mxu0 %v20
  %81 = vmatprep.subr.mxu0 0.0
  %82 = vmatpush1.msra.mxu0 %v19
  %83 = vmatprep.subr.mxu0 0.0
  %84 = vmatpush2.msra.mxu0 %v50
  %85 = vmatprep.subr.mxu0 0.0
  %86 = vmatpush2.msra.mxu0 %v49
  %87 = vmatprep.subr.mxu0 0.0
  %88 = vmatpush2.msra.mxu0 %v48
  %89 = vmatprep.subr.mxu0 0.0
  %90 = vmatpush2.msra.mxu0 %v47
  %91 = vmatprep.subr.mxu0 0.0
  %92 = vmatpush2.msra.mxu0 %v46
  %93 = vmatprep.subr.mxu0 0.0
  %94 = vmatpush2.msra.mxu0 %v45
  %95 = vmatprep.subr.mxu0 0.0
  %96 = vmatpush2.msra.mxu0 %v44
  %97 = vmatprep.subr.mxu0 0.0
  %98 = vmatpush2.msra.mxu0 %v43
  %99 = vmatprep.subr.mxu0 0.0
  %100 = vmatpush2.msra.mxu0 %v42
  %101 = vmatprep.subr.mxu0 0.0
  %102 = vmatpush2.msra.mxu0 %v41
  %103 = vmatprep.subr.mxu0 0.0
  %104 = vmatpush2.msra.mxu0 %v40
  %105 = vmatprep.subr.mxu0 0.0
  %106 = vmatpush2.msra.mxu0 %v39
  %107 = vmatprep.subr.mxu0 0.0
  %108 = vmatpush2.msra.mxu0 %v38
  %109 = vmatprep.subr.mxu0 0.0
  %110 = vmatpush2.msra.mxu0 %v37
  %111 = vmatprep.subr.mxu0 0.0
  %112 = vmatpush2.msra.mxu0 %v36
  %113 = vmatprep.subr.mxu0 0.0
  %114 = vmatpush2.msra.mxu0 %v35
  %115 = vmatprep.mubr.f32.mxu0 %v12
  %116 = vmatmul.mubr.f32.gmra.mxu0 %v11
  %v117 = vpop.f32.mrf.mxu0
  %v118 = vadd.f32 0.0, %v117
  %v119 = vpop.f32.mrf.mxu0
  %120 = vmatprep.mubr.f32.mxu0 %v14
  %121 = vmatmul.mubr.f32.gmra.mxu0 %v13
  %v122 = vpop.f32.mrf.mxu0
  %v123 = vadd.f32 0.0, %v122
  %v124 = vpop.f32.mrf.mxu0
  %125 = vmatprep.mubr.f32.mxu0 %v16
  %126 = vmatmul.mubr.f32.gmra.mxu0 %v15
  %v127 = vpop.f32.mrf.mxu0
  %v128 = vadd.f32 0.0, %v127
  %v129 = vpop.f32.mrf.mxu0
  %130 = vmatprep.mubr.f32.mxu0 %v18
  %131 = vmatmul.mubr.f32.gmra.mxu0 %v17
  %v132 = vpop.f32.mrf.mxu0
  %v133 = vadd.f32 0.0, %v132
  %v134 = vpop.f32.mrf.mxu0
  %135 = vdwg.mxu0
  %136 = vst [vmem:[%s2] sm:$0xff] %v118
  %137 = vst [vmem:[%s2 + $0x8] sm:$0xff] %v123
  %138 = vst [vmem:[%s2 + $0x10] sm:$0xff] %v128
  %139 = vst [vmem:[%s2 + $0x18] sm:$0xff] %v133
  // Predicated region
  $region10: #{separable_conv2d.1} parent=0 // pred_check
    _
  $region11: #{separable_conv2d.1} parent=0 // pred_check_branch
    %141 = sbr.rel (0) target = $region13
  $region12: #{separable_conv2d.1} parent=0 // pred_region
    _
  $region13: #{separable_conv2d.1} parent=0 // pred_fallthru
    _
  // Predicated region
  $region14: #{separable_conv2d.1} parent=0 // pred_check
    _
  $region15: #{separable_conv2d.1} parent=0 // pred_check_branch
    %143 = sbr.rel (0) target = $region17
  $region16: #{separable_conv2d.1} parent=0 // pred_region
    _
  $region17: #{separable_conv2d.1} parent=0 // pred_fallthru
    _

</llo_original>
